<compile_context>
chip_gen: v7x
topology: tpu7x:2x2x1
jax: 0.10.0
libtpu: 0.0.40
codegen_flags: <defaults>
</compile_context>

<pallas_src>
import functools

import jax
import jax.numpy as jnp
from jax.experimental import pallas as pl
from jax.experimental.pallas import tpu as pltpu

_LANE = 128
_SUB = 32                            # sublane multiple safe for f32/bf16/int8/fp8
_MAX_TILE_BYTES = 2 * 1024 * 1024    # per-buffer tile; x2 buffers x2 (in+out) = 8 MiB VMEM
_SPLIT_MIN_BYTES = 2 * 1024 * 1024   # below this, a single block (no extra grid steps)


def _sc_kernel(x_ref, o_ref, *, half_beta):
    x = x_ref[...]
    hb = jnp.asarray(half_beta, dtype=x.dtype)
    # x - clip(x, -hb, hb) == sign(x) * max(|x| - hb, 0)
    o_ref[...] = x - jnp.clip(x, -hb, hb)


def _sc_jnp(x: jax.Array, half_beta: float) -> jax.Array:
    hb = jnp.asarray(half_beta, dtype=x.dtype)
    return x - jnp.clip(x, -hb, hb)


def _choose_tm(rows: int, itemsize: int) -> int:
    """Row-tile size: full-extent for small arrays, balanced even grid for big ones."""
    row_bytes = _LANE * itemsize
    total_bytes = rows * row_bytes
    if total_bytes < _SPLIT_MIN_BYTES or rows < 4 * _SUB:
        # One block equal to the full array dims: always layout-valid, one grid
        # step, no per-step overhead on single-TC chips.
        return rows
    # Large array: tile bytes <= _MAX_TILE_BYTES, even number of blocks (>= 4)
    # so each v7x TensorCore gets >= 2 balanced steps.
    max_tm = max(_SUB, (_MAX_TILE_BYTES // row_bytes) // _SUB * _SUB)
    nblk = pl.cdiv(rows, max_tm)
    if nblk < 4:
        nblk = 4
    nblk = pl.cdiv(nblk, 2) * 2          # even block count -> balanced megacore split
    tm = pl.cdiv(pl.cdiv(rows, nblk), _SUB) * _SUB
    return min(tm, max_tm)


def sc_forward(x: jax.Array, beta: float) -> jax.Array:
    """Applies SC (soft-thresholding) elementwise. x: any shape, float dtype."""
    half_beta = float(beta) * 0.5
    orig_shape = x.shape
    n = x.size
    if n == 0:
        return x
    if n % _LANE != 0:
        # Ragged size: one fused XLA pass (near-roofline) beats any extra
        # slice/pad/concat HBM traffic around a kernel call.
        return _sc_jnp(x, half_beta)

    rows = n // _LANE
    x2d = x.reshape(rows, _LANE)

    tm = _choose_tm(rows, x2d.dtype.itemsize)
    grid = (pl.cdiv(rows, tm),)          # partial last block (if any) is masked by Pallas

    kernel = functools.partial(_sc_kernel, half_beta=half_beta)

    out2d = pl.pallas_call(
        kernel,
        out_shape=jax.ShapeDtypeStruct((rows, _LANE), x.dtype),
        grid=grid,
        in_specs=[pl.BlockSpec((tm, _LANE), lambda i: (i, 0))],
        out_specs=pl.BlockSpec((tm, _LANE), lambda i: (i, 0)),
        compiler_params=pltpu.CompilerParams(
            dimension_semantics=("parallel",),
        ),
    )(x2d)

    return out2d.reshape(orig_shape)


if __name__ == "__main__":
    key = jax.random.PRNGKey(0)
    beta = 0.5
    # NCHW-like input consistent with the PyTorch module's generic elementwise use.
    x = jax.random.normal(key, (2, 4, 16, 16), dtype=jnp.float32)

    out = sc_forward(x, beta)
    out = jax.block_until_ready(out)

    # Reference check in plain JAX (same math as the PyTorch forward).
    ref = jnp.sign(x) * jnp.maximum(jnp.abs(x) - beta / 2.0, 0.0)
    assert out.shape == x.shape and out.dtype == x.dtype
    assert jnp.allclose(out, ref, atol=1e-6), "mismatch vs reference"

    print("KERNEL_OK")
</pallas_src>

<mosaic_0001>
module attributes {stable_mosaic.version = 11 : i64} {
  func.func @_sc_kernel(%arg0: i32, %arg1: memref<16x128xf32, #tpu.memory_space<vmem>>, %arg2: memref<16x128xf32, #tpu.memory_space<vmem>>) attributes {dimension_semantics = [#tpu.dimension_semantics<parallel>], iteration_bounds = array<i64: 1>, scalar_prefetch = 0 : i64, scratch_operands = 0 : i64, tpu.core_type = #tpu.core_type<tc>, window_params = [{transform_indices = @transform_0, window_bounds = array<i64: 16, 128>}, {transform_indices = @transform_1, window_bounds = array<i64: 16, 128>}]} {
    %c0 = arith.constant 0 : index
    %c0_0 = arith.constant 0 : index
    %0 = vector.load %arg1[%c0, %c0_0] : memref<16x128xf32, #tpu.memory_space<vmem>>, vector<16x128xf32>
    %cst = arith.constant 0.000000e+00 : f32
    %cst_1 = arith.constant 2.500000e-01 : f32
    %1 = arith.subf %cst, %cst_1 : f32
    %cst_2 = arith.constant 2.500000e-01 : f32
    %2 = vector.broadcast %1 : f32 to vector<16x128xf32>
    %3 = arith.maximumf %2, %0 : vector<16x128xf32>
    %4 = vector.broadcast %cst_2 : f32 to vector<16x128xf32>
    %5 = arith.minimumf %4, %3 : vector<16x128xf32>
    %6 = arith.subf %0, %5 : vector<16x128xf32>
    %c0_3 = arith.constant 0 : index
    %c0_4 = arith.constant 0 : index
    %7 = vector.load %arg2[%c0_3, %c0_4] : memref<16x128xf32, #tpu.memory_space<vmem>>, vector<16x128xf32>
    tpu.vector_store %arg2[%c0_3, %c0_4], %6 {strides = array<i32>} : memref<16x128xf32, #tpu.memory_space<vmem>>, vector<16x128xf32>,
    return
  }
  func.func @transform_0(%arg0: i32) -> (i32, i32) {
    %c0_i32 = arith.constant 0 : i32
    %c0_i32_0 = arith.constant 0 : i32
    return %arg0, %c0_i32 : i32, i32
  }
  func.func @transform_1(%arg0: i32) -> (i32, i32) {
    %c0_i32 = arith.constant 0 : i32
    %c0_i32_0 = arith.constant 0 : i32
    return %arg0, %c0_i32 : i32, i32
  }
}

</mosaic_0001>

<llo_original>
// kernel: tpu_custom_call.1
$region0: #{tpu_custom_call.1}
  #allocation0 [shape = 'u32[]', space=smem, size = 0x4, offset = 0x4, fixed_abs, tag = 'smem constant byte address 0x4 - core index']
  #allocation1 [shape = 'u32[144,128]{1,0:T(1,128)}', space=vmem, size = 0x12000, scoped, tag = 'internal scratch']
  %s0 = inlined_call_operand.hbm [shape: f32[16,128], index: 0, kind: input, shape index: {}]
  %s1 = inlined_call_operand.hbm [shape: f32[16,128], index: 1, kind: output, shape index: {}]
  %s2 = sld [smem:[#allocation0]]
  $region18: #{tpu_custom_call.1} parent=0
    _
  %s4 = ssub.s32 1, %s2
  %s5 = scalar_select 0, %s4, %s2
  $region1: #{tpu_custom_call.1} parent=0
    #allocation2 [shape = 'u8[8192]{0}', space=vmem, size = 0x2000, scoped, tag = 'input window, operand 0, single buffered']
    #allocation3 [shape = 's32[1]{0}', space=sflag, size = 0x4, scoped, tag = 'scoped memory for tpu_custom_call.1']
    #allocation4 [shape = 's32[1]{0}', space=sflag, size = 0x4, scoped, tag = 'scoped memory for tpu_custom_call.1']
    #allocation5 [shape = 'u8[8192]{0}', space=vmem, size = 0x2000, scoped, tag = 'output window, operand 0, single buffered']
    %6 = vsyncpa [#allocation3], 0
    %7 = vsyncpa [#allocation4], 0
    // Predicated region
    $region2: #{tpu_custom_call.1} parent=1 // pred_check
      _
    $region3: #{tpu_custom_call.1} parent=1 // pred_check_branch
      %9 = sbr.rel (0) target = $region5
    $region4: #{tpu_custom_call.1} parent=1 // pred_region
      %s11 = ssub.s32 256, 256
      %12 = vsyncadd [#allocation3], %s11
      %s13 = sshll.u32 [#allocation2], 4
      %s14 = int_to_ptr.vmem [resolvable:$true] %s13
      %19 = dma.hbm_to_vmem [thread:$0]  %s0, 256, %s14, [#allocation3], 128, 128, 8
    $region5: #{tpu_custom_call.1} parent=1 // pred_fallthru
      _
    // Predicated region
    $region6: #{tpu_custom_call.1} parent=1 // pred_check
      _
    $region7: #{tpu_custom_call.1} parent=1 // pred_check_branch
      %21 = sbr.rel (0) target = $region9
    $region8: #{tpu_custom_call.1} parent=1 // pred_region
      %22 = dma.done [#allocation3], 256
    $region9: #{tpu_custom_call.1} parent=1 // pred_fallthru
      _
    %v23 = vld [vmem:[#allocation2] sm:$0xff]
    %v24 = vld [vmem:[#allocation2 + $0x8] sm:$0xff]
    %v25 = vmax.f32 %v23, -0.25
    %v26 = vmax.f32 %v24, -0.25
    %v27 = vmin.f32 %v25, 0.25
    %v28 = vmin.f32 %v26, 0.25
    %v29 = vsub.f32 %v23, %v27
    %v30 = vsub.f32 %v24, %v28
    %31 = vst [vmem:[#allocation5] sm:$0xff] %v29
    %32 = vst [vmem:[#allocation5 + $0x8] sm:$0xff] %v30
    // Predicated region
    $region10: #{tpu_custom_call.1} parent=1 // pred_check
      _
    $region11: #{tpu_custom_call.1} parent=1 // pred_check_branch
      %34 = sbr.rel (0) target = $region13
    $region12: #{tpu_custom_call.1} parent=1 // pred_region
      %s36 = ssub.s32 256, 256
      %37 = vsyncadd [#allocation4], %s36
      %s38 = sshll.u32 [#allocation5], 4
      %s39 = int_to_ptr.vmem [resolvable:$true] %s38
      %44 = dma.vmem_to_hbm [thread:$0]  %s39, 256, %s1, [#allocation4], 128, 128, 8
    $region13: #{tpu_custom_call.1} parent=1 // pred_fallthru
      _
    // Predicated region
    $region14: #{tpu_custom_call.1} parent=1 // pred_check
      _
    $region15: #{tpu_custom_call.1} parent=1 // pred_check_branch
      %46 = sbr.rel (0) target = $region17
    $region16: #{tpu_custom_call.1} parent=1 // pred_region
      %47 = dma.done [#allocation4], 256
    $region17: #{tpu_custom_call.1} parent=1 // pred_fallthru
      _
    %48 = vsyncpa [#allocation3], 1
    %49 = vsyncpa [#allocation4], 1

</llo_original>
